<compile_context>
chip_gen: v6e
topology: v6e:2x2x1
jax: 0.10.0
libtpu: 0.0.40
codegen_flags: <defaults>
</compile_context>

<pallas_src>
import jax
import jax.numpy as jnp
from jax.experimental import pallas as pl
from jax.experimental.pallas import tpu as pltpu


def _cdiv(a, b):
    return -(-a // b)


def _round_up(x, m):
    return _cdiv(x, m) * m


def _padded_block_bytes(shape, itemsize):
    """Approximate VMEM bytes of one block after (8, 128) layout padding."""
    dims = list(shape)
    if len(dims) == 1:
        dims = [1] + dims
    lead, r, c = dims[:-2], dims[-2], dims[-1]
    n = itemsize * _round_up(r, 8) * _round_up(c, 128)
    for d in lead:
        n *= d
    return n


def user_encoder_kernel(idx1_ref, idx2_ref,            # [TB, 1] int32 (VMEM)
                        xflat_ref, wp_ref, b_ref,      # bf16, bf16, f32
                        tab1_ref, tab2_ref,            # f32 tables (replicated)
                        out_ref):                      # [TB, OUTP] f32
    TB = out_ref.shape[0]
    V1 = tab1_ref.shape[0]
    V2 = tab2_ref.shape[0]

    # ---- categorical embeddings: exact one-hot gather on the MXU ---------------
    oh1 = (jax.lax.broadcasted_iota(jnp.int32, (TB, V1), 1)
           == idx1_ref[...]).astype(jnp.float32)
    oh2 = (jax.lax.broadcasted_iota(jnp.int32, (TB, V2), 1)
           == idx2_ref[...]).astype(jnp.float32)
    e1 = jnp.dot(oh1, tab1_ref[...], preferred_element_type=jnp.float32)
    e2 = jnp.dot(oh2, tab2_ref[...], preferred_element_type=jnp.float32)

    # ---- sequence encoder: mean over time folded into one bf16 MXU matmul ------
    proj = jnp.dot(xflat_ref[...], wp_ref[...],
                   preferred_element_type=jnp.float32) + b_ref[...]
    seq = jnp.maximum(proj, 0.0)

    # ---- single lane-dense output block (pad to 128-lane multiple) -------------
    used = e1.shape[1] + e2.shape[1] + seq.shape[1]
    parts = [e1, e2, seq]
    if out_ref.shape[1] > used:
        parts.append(jnp.zeros((TB, out_ref.shape[1] - used), jnp.float32))
    out_ref[...] = jnp.concatenate(parts, axis=1).astype(out_ref.dtype)


def user_encoder(idx1, idx2, tab1, tab2, x_seq, w, b, *,
                 block_b=128, compute_dtype=jnp.bfloat16):
    """concat(tab1[idx1], tab2[idx2], relu(mean_t(x_seq) @ w + b), axis=1)."""
    B, T, F = x_seq.shape
    V1, D1 = tab1.shape
    V2, D2 = tab2.shape
    H = w.shape[1]
    TF = T * F
    OUT = D1 + D2 + H
    OUTP = _round_up(OUT, 128)

    # Indices become a (B, 1) int32 VMEM input.  Clamp defensively: PyTorch would
    # raise on out-of-range ids; here they would otherwise select nothing / garbage.
    idx1 = jnp.clip(jnp.asarray(idx1).reshape(B, 1).astype(jnp.int32), 0, V1 - 1)
    idx2 = jnp.clip(jnp.asarray(idx2).reshape(B, 1).astype(jnp.int32), 0, V2 - 1)

    # Fold the time-mean into the matmul:
    #   relu(mean_t(x) @ w + b) == relu(reshape(x, (B, T*F)) @ (tile(w,(T,1))/T) + b)
    x_flat = jnp.asarray(x_seq, jnp.float32).reshape(B, TF).astype(compute_dtype)
    w_fold = (jnp.tile(jnp.asarray(w, jnp.float32), (T, 1)) / T).astype(compute_dtype)
    b = jnp.asarray(b, jnp.float32).reshape(1, H)
    # Tables stay f32 so the one-hot lookup is bit-exact (padding_idx=0 semantics
    # rely on row 0 of the passed-in weights, exactly like nn.Embedding's forward).
    tab1 = jnp.asarray(tab1, jnp.float32)
    tab2 = jnp.asarray(tab2, jnp.float32)

    # Batch tiling: TB multiple of 8, and always >= 2 tiles so the "parallel" grid
    # axis feeds both TensorCores on v7x.
    TB = max(8, min(int(block_b), _round_up(_cdiv(B, 2), 8)))
    assert TB % 8 == 0
    Bp = max(_round_up(B, TB), 2 * TB)
    num_tiles = Bp // TB
    if Bp != B:
        pad = Bp - B
        x_flat = jnp.pad(x_flat, ((0, pad), (0, 0)))
        idx1 = jnp.pad(idx1, ((0, pad), (0, 0)))   # padded rows -> id 0 (padding row)
        idx2 = jnp.pad(idx2, ((0, pad), (0, 0)))

    # VMEM budget for the chosen tiles (x2 for double buffering) + headroom,
    # clamped to what the chip actually has (v7x: 64 MiB per TC).
    csize = jnp.dtype(compute_dtype).itemsize
    per_step = (2 * _padded_block_bytes((TB, 1), 4)
                + _padded_block_bytes((TB, TF), csize)
                + _padded_block_bytes((TF, H), csize)
                + _padded_block_bytes((1, H), 4)
                + _padded_block_bytes((V1, D1), 4)
                + _padded_block_bytes((V2, D2), 4)
                + _padded_block_bytes((TB, OUTP), 4))
    try:
        cap = int(0.8 * pltpu.get_tpu_info().vmem_capacity_bytes)
    except Exception:
        cap = int(0.8 * (64 << 20))
    vmem_limit = int(min(2 * per_step + (8 << 20), cap))

    grid_spec = pltpu.PrefetchScalarGridSpec(
        num_scalar_prefetch=0,
        grid=(num_tiles,),
        in_specs=[
            pl.BlockSpec((TB, 1), lambda t: (t, 0)),     # idx1 tile
            pl.BlockSpec((TB, 1), lambda t: (t, 0)),     # idx2 tile
            pl.BlockSpec((TB, TF), lambda t: (t, 0)),    # x_flat tile (lane-dense)
            pl.BlockSpec((TF, H), lambda t: (0, 0)),     # folded weights (replicated)
            pl.BlockSpec((1, H), lambda t: (0, 0)),      # bias (replicated)
            pl.BlockSpec((V1, D1), lambda t: (0, 0)),    # emb table 1 (replicated)
            pl.BlockSpec((V2, D2), lambda t: (0, 0)),    # emb table 2 (replicated)
        ],
        out_specs=pl.BlockSpec((TB, OUTP), lambda t: (t, 0)),
    )

    out = pl.pallas_call(
        user_encoder_kernel,
        out_shape=jax.ShapeDtypeStruct((Bp, OUTP), jnp.float32),
        grid_spec=grid_spec,
        compiler_params=pltpu.CompilerParams(
            dimension_semantics=("parallel",),
            vmem_limit_bytes=vmem_limit,
        ),
    )(idx1, idx2, x_flat, w_fold, b, tab1, tab2)

    # Strip batch padding and the lane padding of the packed output block.
    return out[:B, :OUT]


def reference(idx1, idx2, tab1, tab2, x_seq, w, b):
    e1 = tab1[idx1]
    e2 = tab2[idx2]
    seq = jnp.maximum(jnp.mean(x_seq, axis=1) @ w + jnp.reshape(b, (1, -1)), 0.0)
    return jnp.concatenate([e1, e2, seq], axis=1)


if __name__ == "__main__":
    # Small deterministic shapes consistent with the module.
    B, T, F, H = 2, 8, 16, 32        # batch, seq len, event feature dim, seq_enc.embedding_size
    V1, D1 = 10, 8                   # cat feature 1: num_embeddings, emb_dim
    V2, D2 = 6, 8                    # cat feature 2: num_embeddings, emb_dim

    key = jax.random.PRNGKey(0)
    k1, k2, k3, k4, k5, k6 = jax.random.split(key, 6)

    tab1 = jax.random.normal(k1, (V1, D1), jnp.float32)
    tab2 = jax.random.normal(k2, (V2, D2), jnp.float32)
    # padding_idx=0: nn.Embedding initializes row 0 to zero and its forward simply
    # gathers it; the kernel does the same (one-hot selects row 0).
    tab1 = tab1.at[0].set(0.0)
    tab2 = tab2.at[0].set(0.0)

    w = jax.random.normal(k3, (F, H), jnp.float32) * 0.1
    b = jax.random.normal(k4, (1, H), jnp.float32) * 0.1

    x_seq = jax.random.normal(k5, (B, T, F), jnp.float32)
    idx1 = jnp.array([3, 0], dtype=jnp.int32)                      # includes padding id 0
    idx2 = jax.random.randint(k6, (B,), 0, V2, dtype=jnp.int32)

    out = jax.block_until_ready(user_encoder(idx1, idx2, tab1, tab2, x_seq, w, b))
    ref = reference(idx1, idx2, tab1, tab2, x_seq, w, b)
    assert out.shape == (B, D1 + D2 + H)
    # bf16 matmul (f32 accumulation) for the sequence branch; embeddings are exact.
    assert jnp.allclose(out, ref, atol=2e-2, rtol=2e-2)

    # Also exercise the multi-tile (grid > 2) + batch-padding path.
    B2 = 20
    kk1, kk2, kk3 = jax.random.split(jax.random.PRNGKey(1), 3)
    x_seq2 = jax.random.normal(kk1, (B2, T, F), jnp.float32)
    idx1_2 = jax.random.randint(kk2, (B2,), 0, V1, dtype=jnp.int32)
    idx2_2 = jax.random.randint(kk3, (B2,), 0, V2, dtype=jnp.int32)
    out2 = jax.block_until_ready(
        user_encoder(idx1_2, idx2_2, tab1, tab2, x_seq2, w, b, block_b=8))
    ref2 = reference(idx1_2, idx2_2, tab1, tab2, x_seq2, w, b)
    assert out2.shape == (B2, D1 + D2 + H)
    assert jnp.allclose(out2, ref2, atol=2e-2, rtol=2e-2)

    print("KERNEL_OK")
</pallas_src>

<mosaic_0001>
module attributes {stable_mosaic.version = 11 : i64} {
  func.func @user_encoder_kernel(%arg0: i32, %arg1: memref<8x1xi32, #tpu.memory_space<vmem>>, %arg2: memref<8x1xi32, #tpu.memory_space<vmem>>, %arg3: memref<8x128xbf16, #tpu.memory_space<vmem>>, %arg4: memref<128x32xbf16, #tpu.memory_space<vmem>>, %arg5: memref<1x32xf32, #tpu.memory_space<vmem>>, %arg6: memref<10x8xf32, #tpu.memory_space<vmem>>, %arg7: memref<6x8xf32, #tpu.memory_space<vmem>>, %arg8: memref<8x128xf32, #tpu.memory_space<vmem>>) attributes {dimension_semantics = [#tpu.dimension_semantics<parallel>], iteration_bounds = array<i64: 2>, scalar_prefetch = 0 : i64, scratch_operands = 0 : i64, tpu.core_type = #tpu.core_type<tc>, window_params = [{transform_indices = @transform_0, window_bounds = array<i64: 8, 1>}, {transform_indices = @transform_1, window_bounds = array<i64: 8, 1>}, {transform_indices = @transform_2, window_bounds = array<i64: 8, 128>}, {pipeline_mode = #tpu.pipeline_mode<synchronous>, transform_indices = @transform_3, window_bounds = array<i64: 128, 32>}, {pipeline_mode = #tpu.pipeline_mode<synchronous>, transform_indices = @transform_4, window_bounds = array<i64: 1, 32>}, {pipeline_mode = #tpu.pipeline_mode<synchronous>, transform_indices = @transform_5, window_bounds = array<i64: 10, 8>}, {pipeline_mode = #tpu.pipeline_mode<synchronous>, transform_indices = @transform_6, window_bounds = array<i64: 6, 8>}, {transform_indices = @transform_7, window_bounds = array<i64: 8, 128>}]} {
    %0 = tpu.iota {dimensions = array<i32: 1>} : vector<8x10xi32>
    %c0 = arith.constant 0 : index
    %c0_0 = arith.constant 0 : index
    %1 = vector.load %arg1[%c0, %c0_0] : memref<8x1xi32, #tpu.memory_space<vmem>>, vector<8x1xi32>
    %2 = vector.broadcast %1 : vector<8x1xi32> to vector<8x10xi32>
    %3 = arith.cmpi eq, %0, %2 : vector<8x10xi32>
    %4 = arith.extui %3 : vector<8x10xi1> to vector<8x10xi32>
    %5 = arith.sitofp %4 : vector<8x10xi32> to vector<8x10xf32>
    %6 = tpu.iota {dimensions = array<i32: 1>} : vector<8x6xi32>
    %c0_1 = arith.constant 0 : index
    %c0_2 = arith.constant 0 : index
    %7 = vector.load %arg2[%c0_1, %c0_2] : memref<8x1xi32, #tpu.memory_space<vmem>>, vector<8x1xi32>
    %8 = vector.broadcast %7 : vector<8x1xi32> to vector<8x6xi32>
    %9 = arith.cmpi eq, %6, %8 : vector<8x6xi32>
    %10 = arith.extui %9 : vector<8x6xi1> to vector<8x6xi32>
    %11 = arith.sitofp %10 : vector<8x6xi32> to vector<8x6xf32>
    %c0_3 = arith.constant 0 : index
    %c0_4 = arith.constant 0 : index
    %12 = vector.load %arg6[%c0_3, %c0_4] : memref<10x8xf32, #tpu.memory_space<vmem>>, vector<10x8xf32>
    %cst = arith.constant dense<0.000000e+00> : vector<8x8xf32>
    %13 = tpu.matmul %5, %12, %cst {dimension_numbers = #tpu.dot_dimension_numbers<[1], [0], [0], [1], [0, 0, 1, 1], [], []>} : vector<8x10xf32>, vector<10x8xf32>, vector<8x8xf32> -> vector<8x8xf32>
    %c0_5 = arith.constant 0 : index
    %c0_6 = arith.constant 0 : index
    %14 = vector.load %arg7[%c0_5, %c0_6] : memref<6x8xf32, #tpu.memory_space<vmem>>, vector<6x8xf32>
    %cst_7 = arith.constant dense<0.000000e+00> : vector<8x8xf32>
    %15 = tpu.matmul %11, %14, %cst_7 {dimension_numbers = #tpu.dot_dimension_numbers<[1], [0], [0], [1], [0, 0, 1, 1], [], []>} : vector<8x6xf32>, vector<6x8xf32>, vector<8x8xf32> -> vector<8x8xf32>
    %c0_8 = arith.constant 0 : index
    %c0_9 = arith.constant 0 : index
    %16 = vector.load %arg3[%c0_8, %c0_9] : memref<8x128xbf16, #tpu.memory_space<vmem>>, vector<8x128xbf16>
    %c0_10 = arith.constant 0 : index
    %c0_11 = arith.constant 0 : index
    %17 = vector.load %arg4[%c0_10, %c0_11] : memref<128x32xbf16, #tpu.memory_space<vmem>>, vector<128x32xbf16>
    %cst_12 = arith.constant dense<0.000000e+00> : vector<8x32xf32>
    %18 = tpu.matmul %16, %17, %cst_12 {dimension_numbers = #tpu.dot_dimension_numbers<[1], [0], [0], [1], [0, 0, 1, 1], [], []>} : vector<8x128xbf16>, vector<128x32xbf16>, vector<8x32xf32> -> vector<8x32xf32>
    %c0_13 = arith.constant 0 : index
    %c0_14 = arith.constant 0 : index
    %19 = vector.load %arg5[%c0_13, %c0_14] : memref<1x32xf32, #tpu.memory_space<vmem>>, vector<1x32xf32>
    %20 = vector.broadcast %19 : vector<1x32xf32> to vector<8x32xf32>
    %21 = arith.addf %18, %20 : vector<8x32xf32>
    %cst_15 = arith.constant 0.000000e+00 : f32
    %22 = vector.broadcast %cst_15 : f32 to vector<8x32xf32>
    %23 = arith.maximumf %21, %22 : vector<8x32xf32>
    %cst_16 = arith.constant 0.000000e+00 : f32
    %24 = vector.broadcast %cst_16 : f32 to vector<8x80xf32>
    %25 = tpu.concatenate %13, %15, %23, %24 in 1 : vector<8x8xf32>, vector<8x8xf32>, vector<8x32xf32>, vector<8x80xf32> -> vector<8x128xf32>
    %c0_17 = arith.constant 0 : index
    %c0_18 = arith.constant 0 : index
    %26 = vector.load %arg8[%c0_17, %c0_18] : memref<8x128xf32, #tpu.memory_space<vmem>>, vector<8x128xf32>
    tpu.vector_store %arg8[%c0_17, %c0_18], %25 {strides = array<i32>} : memref<8x128xf32, #tpu.memory_space<vmem>>, vector<8x128xf32>,
    return
  }
  func.func @transform_0(%arg0: i32) -> (i32, i32) {
    %c0_i32 = arith.constant 0 : i32
    %c0_i32_0 = arith.constant 0 : i32
    return %arg0, %c0_i32 : i32, i32
  }
  func.func @transform_1(%arg0: i32) -> (i32, i32) {
    %c0_i32 = arith.constant 0 : i32
    %c0_i32_0 = arith.constant 0 : i32
    return %arg0, %c0_i32 : i32, i32
  }
  func.func @transform_2(%arg0: i32) -> (i32, i32) {
    %c0_i32 = arith.constant 0 : i32
    %c0_i32_0 = arith.constant 0 : i32
    return %arg0, %c0_i32 : i32, i32
  }
  func.func @transform_3(%arg0: i32) -> (i32, i32) {
    %c0_i32 = arith.constant 0 : i32
    %c0_i32_0 = arith.constant 0 : i32
    %c0_i32_1 = arith.constant 0 : i32
    return %c0_i32, %c0_i32_0 : i32, i32
  }
  func.func @transform_4(%arg0: i32) -> (i32, i32) {
    %c0_i32 = arith.constant 0 : i32
    %c0_i32_0 = arith.constant 0 : i32
    %c0_i32_1 = arith.constant 0 : i32
    return %c0_i32, %c0_i32_0 : i32, i32
  }
  func.func @transform_5(%arg0: i32) -> (i32, i32) {
    %c0_i32 = arith.constant 0 : i32
    %c0_i32_0 = arith.constant 0 : i32
    %c0_i32_1 = arith.constant 0 : i32
    return %c0_i32, %c0_i32_0 : i32, i32
  }
  func.func @transform_6(%arg0: i32) -> (i32, i32) {
    %c0_i32 = arith.constant 0 : i32
    %c0_i32_0 = arith.constant 0 : i32
    %c0_i32_1 = arith.constant 0 : i32
    return %c0_i32, %c0_i32_0 : i32, i32
  }
  func.func @transform_7(%arg0: i32) -> (i32, i32) {
    %c0_i32 = arith.constant 0 : i32
    %c0_i32_0 = arith.constant 0 : i32
    return %arg0, %c0_i32 : i32, i32
  }
}

</mosaic_0001>

<llo_original>
// kernel: tpu_custom_call.1
$region0: #{tpu_custom_call.1}
  #allocation0 [shape = 'u32[]', space=smem, size = 0x4, offset = 0x4, fixed_abs, tag = 'smem constant byte address 0x4 - core index']
  #allocation1 [shape = 'u32[144,128]{1,0:T(1,128)}', space=vmem, size = 0x12000, scoped, tag = 'internal scratch']
  %s0 = inlined_call_operand.vmem [shape: s32[16,1], index: 0, kind: input, shape index: {}]
  %s1 = inlined_call_operand.vmem [shape: s32[16,1], index: 1, kind: input, shape index: {}]
  %s2 = inlined_call_operand.vmem [shape: bf16[16,128], index: 2, kind: input, shape index: {}]
  %s3 = inlined_call_operand.vmem [shape: bf16[128,32], index: 3, kind: input, shape index: {}]
  %s4 = inlined_call_operand.vmem [shape: f32[1,32], index: 4, kind: input, shape index: {}]
  %s5 = inlined_call_operand.vmem [shape: f32[10,8], index: 5, kind: input, shape index: {}]
  %s6 = inlined_call_operand.vmem [shape: f32[6,8], index: 6, kind: input, shape index: {}]
  %s7 = inlined_call_operand.hbm [shape: f32[16,128], index: 7, kind: output, shape index: {}]
  %s8 = sld [smem:[#allocation0]]
  $region61: #{tpu_custom_call.1} parent=0
    _
  %s10 = ssub.s32 1, %s8
  %s11 = scalar_select 0, %s10, %s8
  $region1: #{tpu_custom_call.1} parent=0
    #allocation2 [shape = 'u8[8192]{0}', space=vmem, size = 0x2000, scoped, tag = 'output window, operand 0']
    #allocation3 [shape = 's32[2]{0}', space=sflag, size = 0x8, scoped, tag = 'scoped memory for tpu_custom_call.1']
    %12 = vsyncpa [#allocation3], 0
    %s13 = scalar_lea.sflag [#allocation3], 1
    %14 = vsyncpa %s13, 0
    loop: start=0, step=1, limit=4
    $region2: #{tpu_custom_call.1} parent=1 // loop_pre_header
      _
    $region3: #{tpu_custom_call.1} parent=1 // loop_header
      %s16 = sphi 0, %s20
      %p17 = scmp.ge.s32.totalorder %s16, 4
      %s26 = sphi 0, %s28
      %s29 = sphi 0, %s26
      %s30 = sphi 0, %s29
      %s46 = sphi 0, %s30
      %s52 = sphi 0, %s54
      %s55 = sphi 0, %s52
      %s56 = sphi 0, %s55
      %s72 = sphi 0, %s56
      %s78 = sphi 0, %s80
      %s81 = sphi 0, %s78
      %s82 = sphi 0, %s81
      %s98 = sphi 0, %s82
      %s102 = sphi 0, %s102
      %s104 = sphi 0, %s102
      %s105 = sphi 0, %s104
      %s119 = sphi 0, %s105
      %s123 = sphi 0, %s123
      %s125 = sphi 0, %s123
      %s126 = sphi 0, %s125
      %s140 = sphi 0, %s126
      %s144 = sphi 0, %s144
      %s146 = sphi 0, %s144
      %s147 = sphi 0, %s146
      %s161 = sphi 0, %s147
      %s165 = sphi 0, %s165
      %s167 = sphi 0, %s165
      %s168 = sphi 0, %s167
      %s182 = sphi 0, %s168
      %s188 = sphi 0, %s190
      %s191 = sphi 0, %s188
      %s192 = sphi 0, %s191
      %s208 = sphi 0, %s192
    $region4: #{tpu_custom_call.1} parent=1 // loop_header_branch
      %19 = sbr.rel (%p17) target = $region8
    $region5: #{tpu_custom_call.1} parent=1 // loop_body
      %s21 = ssub.s32 %s16, 1
      %s22 = ssub.s32 %s16, 2
      %s23 = sadd.s32 %s16, 1
      %s24 = ssub.s32 %s16, %s23
      %p25 = scmp.eq.s32.totalorder %s24, 0
      %s27 = sadd.s32 %s26, 1
      %s28 = scalar_select %p25, %s26, %s27
      %p31 = pneg %p25
      %p32 = scmp.eq.s32.totalorder %s16, 1
      %p33 = por %p31, %p32
      %p34 = scmp.ne.s32.totalorder %s26, %s29
      %p35 = scmp.eq.s32.totalorder %s16, 0
      %p36 = por %p34, %p35
      %p37 = scmp.ne.s32.totalorder %s26, %s29
      %p38 = scmp.eq.s32.totalorder %s21, 1
      %p39 = por %p37, %p38
      %p40 = scmp.ne.s32.totalorder %s29, %s30
      %p41 = scmp.eq.s32.totalorder %s21, 0
      %p42 = por %p40, %p41
      %p43 = scmp.ne.s32.totalorder %s29, %s30
      %p44 = scmp.eq.s32.totalorder %s22, 1
      %p45 = por %p43, %p44
      %p47 = scmp.ne.s32.totalorder %s30, %s46
      %p48 = scmp.eq.s32.totalorder %s22, 0
      %p49 = por %p47, %p48
      %s50 = ssub.s32 %s16, %s23
      %p51 = scmp.eq.s32.totalorder %s50, 0
      %s53 = sadd.s32 %s52, 1
      %s54 = scalar_select %p51, %s52, %s53
      %p57 = pneg %p51
      %p58 = scmp.eq.s32.totalorder %s16, 1
      %p59 = por %p57, %p58
      %p60 = scmp.ne.s32.totalorder %s52, %s55
      %p61 = scmp.eq.s32.totalorder %s16, 0
      %p62 = por %p60, %p61
      %p63 = scmp.ne.s32.totalorder %s52, %s55
      %p64 = scmp.eq.s32.totalorder %s21, 1
      %p65 = por %p63, %p64
      %p66 = scmp.ne.s32.totalorder %s55, %s56
      %p67 = scmp.eq.s32.totalorder %s21, 0
      %p68 = por %p66, %p67
      %p69 = scmp.ne.s32.totalorder %s55, %s56
      %p70 = scmp.eq.s32.totalorder %s22, 1
      %p71 = por %p69, %p70
      %p73 = scmp.ne.s32.totalorder %s56, %s72
      %p74 = scmp.eq.s32.totalorder %s22, 0
      %p75 = por %p73, %p74
      %s76 = ssub.s32 %s16, %s23
      %p77 = scmp.eq.s32.totalorder %s76, 0
      %s79 = sadd.s32 %s78, 1
      %s80 = scalar_select %p77, %s78, %s79
      %p83 = pneg %p77
      %p84 = scmp.eq.s32.totalorder %s16, 1
      %p85 = por %p83, %p84
      %p86 = scmp.ne.s32.totalorder %s78, %s81
      %p87 = scmp.eq.s32.totalorder %s16, 0
      %p88 = por %p86, %p87
      %p89 = scmp.ne.s32.totalorder %s78, %s81
      %p90 = scmp.eq.s32.totalorder %s21, 1
      %p91 = por %p89, %p90
      %p92 = scmp.ne.s32.totalorder %s81, %s82
      %p93 = scmp.eq.s32.totalorder %s21, 0
      %p94 = por %p92, %p93
      %p95 = scmp.ne.s32.totalorder %s81, %s82
      %p96 = scmp.eq.s32.totalorder %s22, 1
      %p97 = por %p95, %p96
      %p99 = scmp.ne.s32.totalorder %s82, %s98
      %p100 = scmp.eq.s32.totalorder %s22, 0
      %p101 = por %p99, %p100
      %s103 = sadd.s32 %s102, 1
      %p106 = scmp.eq.s32.totalorder %s16, 1
      %p107 = scmp.ne.s32.totalorder %s102, %s104
      %p108 = scmp.eq.s32.totalorder %s16, 0
      %p109 = por %p107, %p108
      %p110 = scmp.ne.s32.totalorder %s102, %s104
      %p111 = scmp.eq.s32.totalorder %s21, 1
      %p112 = por %p110, %p111
      %p113 = scmp.ne.s32.totalorder %s104, %s105
      %p114 = scmp.eq.s32.totalorder %s21, 0
      %p115 = por %p113, %p114
      %p116 = scmp.ne.s32.totalorder %s104, %s105
      %p117 = scmp.eq.s32.totalorder %s22, 1
      %p118 = por %p116, %p117
      %p120 = scmp.ne.s32.totalorder %s105, %s119
      %p121 = scmp.eq.s32.totalorder %s22, 0
      %p122 = por %p120, %p121
      %s124 = sadd.s32 %s123, 1
      %p127 = scmp.eq.s32.totalorder %s16, 1
      %p128 = scmp.ne.s32.totalorder %s123, %s125
      %p129 = scmp.eq.s32.totalorder %s16, 0
      %p130 = por %p128, %p129
      %p131 = scmp.ne.s32.totalorder %s123, %s125
      %p132 = scmp.eq.s32.totalorder %s21, 1
      %p133 = por %p131, %p132
      %p134 = scmp.ne.s32.totalorder %s125, %s126
      %p135 = scmp.eq.s32.totalorder %s21, 0
      %p136 = por %p134, %p135
      %p137 = scmp.ne.s32.totalorder %s125, %s126
      %p138 = scmp.eq.s32.totalorder %s22, 1
      %p139 = por %p137, %p138
      %p141 = scmp.ne.s32.totalorder %s126, %s140
      %p142 = scmp.eq.s32.totalorder %s22, 0
      %p143 = por %p141, %p142
      %s145 = sadd.s32 %s144, 1
      %p148 = scmp.eq.s32.totalorder %s16, 1
      %p149 = scmp.ne.s32.totalorder %s144, %s146
      %p150 = scmp.eq.s32.totalorder %s16, 0
      %p151 = por %p149, %p150
      %p152 = scmp.ne.s32.totalorder %s144, %s146
      %p153 = scmp.eq.s32.totalorder %s21, 1
      %p154 = por %p152, %p153
      %p155 = scmp.ne.s32.totalorder %s146, %s147
      %p156 = scmp.eq.s32.totalorder %s21, 0
      %p157 = por %p155, %p156
      %p158 = scmp.ne.s32.totalorder %s146, %s147
      %p159 = scmp.eq.s32.totalorder %s22, 1
      %p160 = por %p158, %p159
      %p162 = scmp.ne.s32.totalorder %s147, %s161
      %p163 = scmp.eq.s32.totalorder %s22, 0
      %p164 = por %p162, %p163
      %s166 = sadd.s32 %s165, 1
      %p169 = scmp.eq.s32.totalorder %s16, 1
      %p170 = scmp.ne.s32.totalorder %s165, %s167
      %p171 = scmp.eq.s32.totalorder %s16, 0
      %p172 = por %p170, %p171
      %p173 = scmp.ne.s32.totalorder %s165, %s167
      %p174 = scmp.eq.s32.totalorder %s21, 1
      %p175 = por %p173, %p174
      %p176 = scmp.ne.s32.totalorder %s167, %s168
      %p177 = scmp.eq.s32.totalorder %s21, 0
      %p178 = por %p176, %p177
      %p179 = scmp.ne.s32.totalorder %s167, %s168
      %p180 = scmp.eq.s32.totalorder %s22, 1
      %p181 = por %p179, %p180
      %p183 = scmp.ne.s32.totalorder %s168, %s182
      %p184 = scmp.eq.s32.totalorder %s22, 0
      %p185 = por %p183, %p184
      %s186 = ssub.s32 %s16, %s23
      %p187 = scmp.eq.s32.totalorder %s186, 0
      %s189 = sadd.s32 %s188, 1
      %s190 = scalar_select %p187, %s188, %s189
      %p193 = pneg %p187
      %p194 = scmp.eq.s32.totalorder %s16, 1
      %p195 = por %p193, %p194
      %p196 = scmp.ne.s32.totalorder %s188, %s191
      %p197 = scmp.eq.s32.totalorder %s16, 0
      %p198 = por %p196, %p197
      %p199 = scmp.ne.s32.totalorder %s188, %s191
      %p200 = scmp.eq.s32.totalorder %s21, 1
      %p201 = por %p199, %p200
      %p202 = scmp.ne.s32.totalorder %s191, %s192
      %p203 = scmp.eq.s32.totalorder %s21, 0
      %p204 = por %p202, %p203
      %p205 = scmp.ne.s32.totalorder %s191, %s192
      %p206 = scmp.eq.s32.totalorder %s22, 1
      %p207 = por %p205, %p206
      %p209 = scmp.ne.s32.totalorder %s192, %s208
      %p210 = scmp.eq.s32.totalorder %s22, 0
      %p211 = por %p209, %p210
      %p212 = scmp.le.s32.totalorder 1, %s16
      %p213 = scmp.lt.s32.totalorder %s16, 3
      %p214 = pnand %p212, %p213
      %p215 = pneg %p214
      // Predicated region
      $region9: #{tpu_custom_call.1} parent=5 // pred_check
        _
      $region10: #{tpu_custom_call.1} parent=5 // pred_check_branch
        %217 = sbr.rel (%p214) target = $region12
      $region11: #{tpu_custom_call.1} parent=5 // pred_region
        %s218 = ssub.s32 %s16, 1
        // Predicated region
        $region13: #{tpu_custom_call.1} parent=11 // pred_check
          %p219 = pneg %p115
        $region14: #{tpu_custom_call.1} parent=11 // pred_check_branch
          %221 = sbr.rel (%p219) target = $region16
        $region15: #{tpu_custom_call.1} parent=11 // pred_region
          _
        $region16: #{tpu_custom_call.1} parent=11 // pred_fallthru
          _
        // Predicated region
        $region17: #{tpu_custom_call.1} parent=11 // pred_check
          %p222 = pneg %p136
        $region18: #{tpu_custom_call.1} parent=11 // pred_check_branch
          %224 = sbr.rel (%p222) target = $region20
        $region19: #{tpu_custom_call.1} parent=11 // pred_region
          _
        $region20: #{tpu_custom_call.1} parent=11 // pred_fallthru
          _
        // Predicated region
        $region21: #{tpu_custom_call.1} parent=11 // pred_check
          %p225 = pneg %p157
        $region22: #{tpu_custom_call.1} parent=11 // pred_check_branch
          %227 = sbr.rel (%p225) target = $region24
        $region23: #{tpu_custom_call.1} parent=11 // pred_region
          _
        $region24: #{tpu_custom_call.1} parent=11 // pred_fallthru
          _
        // Predicated region
        $region25: #{tpu_custom_call.1} parent=11 // pred_check
          %p228 = pneg %p178
        $region26: #{tpu_custom_call.1} parent=11 // pred_check_branch
          %230 = sbr.rel (%p228) target = $region28
        $region27: #{tpu_custom_call.1} parent=11 // pred_region
          _
        $region28: #{tpu_custom_call.1} parent=11 // pred_fallthru
          _
      $region12: #{tpu_custom_call.1} parent=5 // pred_fallthru
        _
      %p231 = scmp.lt.s32.totalorder %s16, 2
      // Predicated region
      $region29: #{tpu_custom_call.1} parent=5 // pred_check
        %p232 = pneg %p231
      $region30: #{tpu_custom_call.1} parent=5 // pred_check_branch
        %234 = sbr.rel (%p232) target = $region32
      $region31: #{tpu_custom_call.1} parent=5 // pred_region
        // Predicated region
        $region33: #{tpu_custom_call.1} parent=31 // pred_check
          %p235 = pneg %p36
        $region34: #{tpu_custom_call.1} parent=31 // pred_check_branch
          %237 = sbr.rel (%p235) target = $region36
        $region35: #{tpu_custom_call.1} parent=31 // pred_region
          %p238 = scmp.lt.s32.totalorder %s16, 1
          %s239 = scalar_select %p238, %s16, 1
          %s240 = smul.addr %s239, 8
          %s241 = scalar_lea.vmem %s0, %s240
        $region36: #{tpu_custom_call.1} parent=31 // pred_fallthru
          _
        // Predicated region
        $region37: #{tpu_custom_call.1} parent=31 // pred_check
          %p242 = pneg %p62
        $region38: #{tpu_custom_call.1} parent=31 // pred_check_branch
          %244 = sbr.rel (%p242) target = $region40
        $region39: #{tpu_custom_call.1} parent=31 // pred_region
          %p245 = scmp.lt.s32.totalorder %s16, 1
          %s246 = scalar_select %p245, %s16, 1
          %s247 = smul.addr %s246, 8
          %s248 = scalar_lea.vmem %s1, %s247
        $region40: #{tpu_custom_call.1} parent=31 // pred_fallthru
          _
        // Predicated region
        $region41: #{tpu_custom_call.1} parent=31 // pred_check
          %p249 = pneg %p88
        $region42: #{tpu_custom_call.1} parent=31 // pred_check_branch
          %251 = sbr.rel (%p249) target = $region44
        $region43: #{tpu_custom_call.1} parent=31 // pred_region
          %p252 = scmp.lt.s32.totalorder %s16, 1
          %s253 = scalar_select %p252, %s16, 1
          %s254 = smul.addr %s253, 4
          %s255 = scalar_lea.vmem %s2, %s254
        $region44: #{tpu_custom_call.1} parent=31 // pred_fallthru
          _
      $region32: #{tpu_custom_call.1} parent=5 // pred_fallthru
        _
      %p256 = scmp.le.s32.totalorder 1, %s16
      %p257 = scmp.lt.s32.totalorder %s16, 3
      %p258 = pnand %p256, %p257
      %p259 = pneg %p258
      // Predicated region
      $region45: #{tpu_custom_call.1} parent=5 // pred_check
        _
      $region46: #{tpu_custom_call.1} parent=5 // pred_check_branch
        %261 = sbr.rel (%p258) target = $region48
      $region47: #{tpu_custom_call.1} parent=5 // pred_region
        %s262 = ssub.s32 %s16, 1
        %p263 = scmp.lt.s32.totalorder %s21, 1
        %s264 = scalar_select %p263, %s21, 1
        %s265 = smul.addr %s264, 8
        %s266 = scalar_lea.vmem %s0, %s265
        %p267 = pneg %p42
        %p268 = pneg %p39
        %p269 = scmp.lt.s32.totalorder %s21, 1
        %s270 = scalar_select %p269, %s21, 1
        %s271 = smul.addr %s270, 8
        %s272 = scalar_lea.vmem %s1, %s271
        %p273 = pneg %p68
        %p274 = pneg %p65
        %p275 = scmp.lt.s32.totalorder %s21, 1
        %s276 = scalar_select %p275, %s21, 1
        %s277 = smul.addr %s276, 4
        %s278 = scalar_lea.vmem %s2, %s277
        %p279 = pneg %p94
        %p280 = pneg %p91
        %p281 = pneg %p115
        %p282 = pneg %p112
        %p283 = pneg %p136
        %p284 = pneg %p133
        %p285 = pneg %p157
        %p286 = pneg %p154
        %p287 = pneg %p178
        %p288 = pneg %p175
        %p289 = pneg %p204
        %p290 = pneg %p201
        %s291 = sand.u32 %s191, 1
        %s292 = scalar_lea.sflag [#allocation3], %s291
        %s293 = sand.u32 %s191, 1
        %s294 = smul.addr %s293, 8
        %s295 = scalar_lea.vmem [#allocation2], %s294
        %p296 = scmp.lt.s32.totalorder %s21, 1
        %s297 = scalar_select %p296, %s21, 1
        %s298 = smul.addr %s297, 8
        %s299 = scalar_lea.vmem %s0, %s298
        %p300 = scmp.lt.s32.totalorder %s21, 1
        %s301 = scalar_select %p300, %s21, 1
        %s302 = smul.addr %s301, 8
        %s303 = scalar_lea.vmem %s1, %s302
        %p304 = scmp.lt.s32.totalorder %s21, 1
        %s305 = scalar_select %p304, %s21, 1
        %s306 = smul.addr %s305, 4
        %s307 = scalar_lea.vmem %s2, %s306
        %v309 = vlaneseq
        %v310 = vand.u32 %v309, 127
        %v311 = vld [vmem:[%s299] sm:$0xff]
        %312 = vset.pattern.permute.xlu0 0
        %313 = vperm.xlu0 %312, %v311
        %v314 = vpop.permute.xlu0 %313
        %vm315 = vcmp.eq.s32.totalorder %v310, %v314
        %v316 = vsel %vm315, 1, 0
        %v317 = vcvt.s32.f32 %v316
        %v318 = vld [vmem:[%s303] sm:$0xff]
        %319 = vset.pattern.permute.xlu0 0
        %320 = vperm.xlu0 %319, %v318
        %v321 = vpop.permute.xlu0 %320
        %vm322 = vcmp.eq.s32.totalorder %v310, %v321
        %v323 = vsel %vm322, 1, 0
        %v324 = vcvt.s32.f32 %v323
        %v325 = vld [vmem:[%s5] sm:$0xff]
        %v326 = vld [vmem:[%s5 + $0x8] sm:$0x3]
        %vm327 = vcmask 80896
        %v329 = vsel %vm327, %v317, 0
        %vm331 = vcmask 1041408
        %v333 = vsel %vm331, %v326, 0
        %335 = vmatprep.subr.mxu0 0.0
        %336 = vmatpush1.msra.mxu0 0.0
        %337 = vmatprep.subr.mxu0 0.0
        %338 = vmatpush1.msra.mxu0 0.0
        %339 = vmatprep.subr.mxu0 0.0
        %340 = vmatpush1.msra.mxu0 0.0
        %341 = vmatprep.subr.mxu0 0.0
        %342 = vmatpush1.msra.mxu0 0.0
        %343 = vmatprep.subr.mxu0 0.0
        %344 = vmatpush1.msra.mxu0 0.0
        %345 = vmatprep.subr.mxu0 0.0
        %346 = vmatpush1.msra.mxu0 0.0
        %347 = vmatprep.subr.mxu0 0.0
        %348 = vmatpush1.msra.mxu0 0.0
        %349 = vmatprep.subr.mxu0 0.0
        %350 = vmatpush1.msra.mxu0 0.0
        %351 = vmatprep.subr.mxu0 0.0
        %352 = vmatpush1.msra.mxu0 0.0
        %353 = vmatprep.subr.mxu0 0.0
        %354 = vmatpush1.msra.mxu0 0.0
        %355 = vmatprep.subr.mxu0 0.0
        %356 = vmatpush1.msra.mxu0 0.0
        %357 = vmatprep.subr.mxu0 0.0
        %358 = vmatpush1.msra.mxu0 0.0
        %359 = vmatprep.subr.mxu0 0.0
        %360 = vmatpush1.msra.mxu0 0.0
        %361 = vmatprep.subr.mxu0 0.0
        %362 = vmatpush1.msra.mxu0 0.0
        %363 = vmatprep.subr.mxu0 0.0
        %364 = vmatpush1.msra.mxu0 %v333
        %365 = vmatprep.subr.mxu0 0.0
        %366 = vmatpush1.msra.mxu0 %v325
        %367 = vmatprep.subr.mxu0 0.0
        %368 = vmatpush2.msra.mxu0 0.0
        %369 = vmatprep.subr.mxu0 0.0
        %370 = vmatpush2.msra.mxu0 0.0
        %371 = vmatprep.subr.mxu0 0.0
        %372 = vmatpush2.msra.mxu0 0.0
        %373 = vmatprep.subr.mxu0 0.0
        %374 = vmatpush2.msra.mxu0 0.0
        %375 = vmatprep.subr.mxu0 0.0
        %376 = vmatpush2.msra.mxu0 0.0
        %377 = vmatprep.subr.mxu0 0.0
        %378 = vmatpush2.msra.mxu0 0.0
        %379 = vmatprep.subr.mxu0 0.0
        %380 = vmatpush2.msra.mxu0 0.0
        %381 = vmatprep.subr.mxu0 0.0
        %382 = vmatpush2.msra.mxu0 0.0
        %383 = vmatprep.subr.mxu0 0.0
        %384 = vmatpush2.msra.mxu0 0.0
        %385 = vmatprep.subr.mxu0 0.0
        %386 = vmatpush2.msra.mxu0 0.0
        %387 = vmatprep.subr.mxu0 0.0
        %388 = vmatpush2.msra.mxu0 0.0
        %389 = vmatprep.subr.mxu0 0.0
        %390 = vmatpush2.msra.mxu0 0.0
        %391 = vmatprep.subr.mxu0 0.0
        %392 = vmatpush2.msra.mxu0 0.0
        %393 = vmatprep.subr.mxu0 0.0
        %394 = vmatpush2.msra.mxu0 0.0
        %395 = vmatprep.subr.mxu0 0.0
        %396 = vmatpush2.msra.mxu0 0.0
        %397 = vmatprep.subr.mxu0 0.0
        %398 = vmatpush2.msra.mxu0 0.0
        %399 = vmatprep.mubr.f32.mxu0 0.0
        %400 = vmatmul.mubr.f32.gmra.mxu0 %v329
        %v401 = vpop.f32.mrf.mxu0
        %v402 = vadd.f32 0.0, %v401
        %v403 = vpop.f32.mrf.mxu0
        %404 = vdwg.mxu0
        %v405 = vld [vmem:[%s6] sm:$0x3f]
        %vm406 = vcmask 48128
        %v408 = vsel %vm406, %v324, 0
        %vm410 = vcmask 1045504
        %v412 = vsel %vm410, %v405, 0
        %414 = vmatprep.subr.mxu0 0.0
        %415 = vmatpush1.msra.mxu0 0.0
        %416 = vmatprep.subr.mxu0 0.0
        %417 = vmatpush1.msra.mxu0 0.0
        %418 = vmatprep.subr.mxu0 0.0
        %419 = vmatpush1.msra.mxu0 0.0
        %420 = vmatprep.subr.mxu0 0.0
        %421 = vmatpush1.msra.mxu0 0.0
        %422 = vmatprep.subr.mxu0 0.0
        %423 = vmatpush1.msra.mxu0 0.0
        %424 = vmatprep.subr.mxu0 0.0
        %425 = vmatpush1.msra.mxu0 0.0
        %426 = vmatprep.subr.mxu0 0.0
        %427 = vmatpush1.msra.mxu0 0.0
        %428 = vmatprep.subr.mxu0 0.0
        %429 = vmatpush1.msra.mxu0 0.0
        %430 = vmatprep.subr.mxu0 0.0
        %431 = vmatpush1.msra.mxu0 0.0
        %432 = vmatprep.subr.mxu0 0.0
        %433 = vmatpush1.msra.mxu0 0.0
        %434 = vmatprep.subr.mxu0 0.0
        %435 = vmatpush1.msra.mxu0 0.0
        %436 = vmatprep.subr.mxu0 0.0
        %437 = vmatpush1.msra.mxu0 0.0
        %438 = vmatprep.subr.mxu0 0.0
        %439 = vmatpush1.msra.mxu0 0.0
        %440 = vmatprep.subr.mxu0 0.0
        %441 = vmatpush1.msra.mxu0 0.0
        %442 = vmatprep.subr.mxu0 0.0
        %443 = vmatpush1.msra.mxu0 0.0
        %444 = vmatprep.subr.mxu0 0.0
        %445 = vmatpush1.msra.mxu0 %v412
        %446 = vmatprep.subr.mxu0 0.0
        %447 = vmatpush2.msra.mxu0 0.0
        %448 = vmatprep.subr.mxu0 0.0
        %449 = vmatpush2.msra.mxu0 0.0
        %450 = vmatprep.subr.mxu0 0.0
        %451 = vmatpush2.msra.mxu0 0.0
        %452 = vmatprep.subr.mxu0 0.0
        %453 = vmatpush2.msra.mxu0 0.0
        %454 = vmatprep.subr.mxu0 0.0
        %455 = vmatpush2.msra.mxu0 0.0
        %456 = vmatprep.subr.mxu0 0.0
        %457 = vmatpush2.msra.mxu0 0.0
        %458 = vmatprep.subr.mxu0 0.0
        %459 = vmatpush2.msra.mxu0 0.0
        %460 = vmatprep.subr.mxu0 0.0
        %461 = vmatpush2.msra.mxu0 0.0
        %462 = vmatprep.subr.mxu0 0.0
        %463 = vmatpush2.msra.mxu0 0.0
        %464 = vmatprep.subr.mxu0 0.0
        %465 = vmatpush2.msra.mxu0 0.0
        %466 = vmatprep.subr.mxu0 0.0
        %467 = vmatpush2.msra.mxu0 0.0
        %468 = vmatprep.subr.mxu0 0.0
        %469 = vmatpush2.msra.mxu0 0.0
        %470 = vmatprep.subr.mxu0 0.0
        %471 = vmatpush2.msra.mxu0 0.0
        %472 = vmatprep.subr.mxu0 0.0
        %473 = vmatpush2.msra.mxu0 0.0
        %474 = vmatprep.subr.mxu0 0.0
        %475 = vmatpush2.msra.mxu0 0.0
        %476 = vmatprep.subr.mxu0 0.0
        %477 = vmatpush2.msra.mxu0 0.0
        %478 = vmatprep.mubr.f32.mxu0 0.0
        %479 = vmatmul.mubr.f32.gmra.mxu0 %v408
        %v480 = vpop.f32.mrf.mxu0
        %v481 = vadd.f32 0.0, %v480
        %v482 = vpop.f32.mrf.mxu0
        %483 = vdwg.mxu0
        %v484 = vld [vmem:[%s307] sm:$0xf]
        %v485 = vld [vmem:[%s3] sm:$0xf]
        %v486 = vld [vmem:[%s3 + $0x4] sm:$0xf]
        %v487 = vld [vmem:[%s3 + $0x8] sm:$0xf]
        %v488 = vld [vmem:[%s3 + $0xc] sm:$0xf]
        %v489 = vld [vmem:[%s3 + $0x10] sm:$0xf]
        %v490 = vld [vmem:[%s3 + $0x14] sm:$0xf]
        %v491 = vld [vmem:[%s3 + $0x18] sm:$0xf]
        %v492 = vld [vmem:[%s3 + $0x1c] sm:$0xf]
        %v493 = vld [vmem:[%s3 + $0x20] sm:$0xf]
        %v494 = vld [vmem:[%s3 + $0x24] sm:$0xf]
        %v495 = vld [vmem:[%s3 + $0x28] sm:$0xf]
        %v496 = vld [vmem:[%s3 + $0x2c] sm:$0xf]
        %v497 = vld [vmem:[%s3 + $0x30] sm:$0xf]
        %v498 = vld [vmem:[%s3 + $0x34] sm:$0xf]
        %v499 = vld [vmem:[%s3 + $0x38] sm:$0xf]
        %v500 = vld [vmem:[%s3 + $0x3c] sm:$0xf]
        %v501 = vld [vmem:[%s4] sm:$0x1]
        %v503 = vlaneseq
        %v504 = vshrl.u32 %v503, 7
        %v505 = vsub.s32 0, %v504
        %v506 = vrot.slane %v501, %v505
        %v524 = vunpack.c.l.b16 %v485
        %v525 = vunpack.c.l.b16 %v486
        %v526 = vunpack.c.l.b16 %v487
        %v527 = vunpack.c.l.b16 %v488
        %v528 = vunpack.c.l.b16 %v489
        %v529 = vunpack.c.l.b16 %v490
        %v530 = vunpack.c.l.b16 %v491
        %v531 = vunpack.c.l.b16 %v492
        %v532 = vunpack.c.l.b16 %v493
        %v533 = vunpack.c.l.b16 %v494
        %v534 = vunpack.c.l.b16 %v495
        %v535 = vunpack.c.l.b16 %v496
        %v536 = vunpack.c.l.b16 %v497
        %v537 = vunpack.c.l.b16 %v498
        %v538 = vunpack.c.l.b16 %v499
        %v539 = vunpack.c.l.b16 %v500
        %v540 = vpack.c.b16 %v525, %v524
        %v541 = vpack.c.b16 %v527, %v526
        %v542 = vpack.c.b16 %v529, %v528
        %v543 = vpack.c.b16 %v531, %v530
        %v544 = vpack.c.b16 %v533, %v532
        %v545 = vpack.c.b16 %v535, %v534
        %v546 = vpack.c.b16 %v537, %v536
        %v547 = vpack.c.b16 %v539, %v538
        %556 = vmatprep.subr.bf16.mxu0 0
        %557 = vmatpush1.bf16.msra.mxu0 %v547
        %558 = vmatprep.subr.bf16.mxu0 0
        %559 = vmatpush1.bf16.msra.mxu0 %v546
        %560 = vmatprep.subr.bf16.mxu0 0
        %561 = vmatpush1.bf16.msra.mxu0 %v545
        %562 = vmatprep.subr.bf16.mxu0 0
        %563 = vmatpush1.bf16.msra.mxu0 %v544
        %564 = vmatprep.subr.bf16.mxu0 0
        %565 = vmatpush1.bf16.msra.mxu0 %v543
        %566 = vmatprep.subr.bf16.mxu0 0
        %567 = vmatpush1.bf16.msra.mxu0 %v542
        %568 = vmatprep.subr.bf16.mxu0 0
        %569 = vmatpush1.bf16.msra.mxu0 %v541
        %570 = vmatprep.subr.bf16.mxu0 0
        %571 = vmatpush1.bf16.msra.mxu0 %v540
        %572 = vmatprep.subr.bf16.mxu0 0
        %573 = vmatpush2.bf16.msra.mxu0 0
        %574 = vmatprep.subr.bf16.mxu0 0
        %575 = vmatpush2.bf16.msra.mxu0 0
        %576 = vmatprep.subr.bf16.mxu0 0
        %577 = vmatpush2.bf16.msra.mxu0 0
        %578 = vmatprep.subr.bf16.mxu0 0
        %579 = vmatpush2.bf16.msra.mxu0 0
        %580 = vmatprep.subr.bf16.mxu0 0
        %581 = vmatpush2.bf16.msra.mxu0 0
        %582 = vmatprep.subr.bf16.mxu0 0
        %583 = vmatpush2.bf16.msra.mxu0 0
        %584 = vmatprep.subr.bf16.mxu0 0
        %585 = vmatpush2.bf16.msra.mxu0 0
        %586 = vmatprep.subr.bf16.mxu0 0
        %587 = vmatpush2.bf16.msra.mxu0 0
        %588 = vmatprep.mubr.bf16.mxu0 0
        %589 = vmatmul.mubr.bf16.gmra.mxu0 %v484
        %v590 = vpop.f32.mrf.mxu0
        %v591 = vadd.f32 %v506, %v590
        %v592 = vpop.f32.mrf.mxu0
        %v593 = vpop.f32.mrf.mxu0
        %v594 = vpop.f32.mrf.mxu0
        %595 = vdwg.mxu0
        %v596 = vmax.f32 %v591, 0.0
        %598 = vrot.lane.b32.xlu0 %v481, 8
        %v599 = vpop.permute.xlu0 %598
        %602 = vrot.lane.b32.xlu0 %v596, 16
        %v603 = vpop.permute.xlu0 %602
        %vm605 = vcmask 64512
        %v606 = vsel %vm605, %v402, %v599
        %vm607 = vcmask 130048
        %v608 = vsel %vm607, %v606, %v603
        %vm609 = vcmask 392192
        %v610 = vsel %vm609, %v608, 0.0
        %611 = vst [vmem:[%s295] sm:$0xff] %v610
        %s612 = sand.u32 %s191, 1
        %s613 = scalar_lea.sflag [#allocation3], %s612
        %s614 = sand.u32 %s191, 1
        %s615 = smul.addr %s614, 8
        %s616 = scalar_lea.vmem [#allocation2], %s615
        // Predicated region
        $region49: #{tpu_custom_call.1} parent=47 // pred_check
          %p617 = pneg %p201
        $region50: #{tpu_custom_call.1} parent=47 // pred_check_branch
          %619 = sbr.rel (%p617) target = $region52
        $region51: #{tpu_custom_call.1} parent=47 // pred_region
          %s621 = ssub.s32 128, 128
          %622 = vsyncadd %s613, %s621
          %s623 = smul.addr %s21, 128
          %s624 = scalar_lea.hbm %s7, %s623
          %s626 = sshll.u32 %s616, 4
          %s627 = int_to_ptr.vmem [resolvable:$true] %s626
          %629 = dma.vmem_to_hbm [thread:$0]  %s627, 128, %s624, %s613
        $region52: #{tpu_custom_call.1} parent=47 // pred_fallthru
          _
      $region48: #{tpu_custom_call.1} parent=5 // pred_fallthru
        _
      %p630 = scmp.le.s32.totalorder 2, %s16
      // Predicated region
      $region53: #{tpu_custom_call.1} parent=5 // pred_check
        %p631 = pneg %p630
      $region54: #{tpu_custom_call.1} parent=5 // pred_check_branch
        %633 = sbr.rel (%p631) target = $region56
      $region55: #{tpu_custom_call.1} parent=5 // pred_region
        %s634 = ssub.s32 %s16, 2
        // Predicated region
        $region57: #{tpu_custom_call.1} parent=55 // pred_check
          %p635 = pneg %p207
        $region58: #{tpu_custom_call.1} parent=55 // pred_check_branch
          %637 = sbr.rel (%p635) target = $region60
        $region59: #{tpu_custom_call.1} parent=55 // pred_region
          %s638 = sand.u32 %s192, 1
          %s639 = scalar_lea.sflag [#allocation3], %s638
          %s640 = sand.u32 %s192, 1
          %s641 = smul.addr %s640, 8
          %s642 = scalar_lea.vmem [#allocation2], %s641
          %643 = dma.done %s639, 128
        $region60: #{tpu_custom_call.1} parent=55 // pred_fallthru
          _
      $region56: #{tpu_custom_call.1} parent=5 // pred_fallthru
        _
    $region6: #{tpu_custom_call.1} parent=1 // loop_footer
      %s20 = sadd.s32 1, %s16
    $region7: #{tpu_custom_call.1} parent=1 // loop_footer_branch
      %15 = sbr.rel target = $region3
    $region8: #{tpu_custom_call.1} parent=1 // loop_exit
      _
    %644 = vsyncpa [#allocation3], 1
    %s645 = scalar_lea.sflag [#allocation3], 1
    %646 = vsyncpa %s645, 1

</llo_original>
